<compile_context>
chip_gen: v6e
topology: v6e:2x2x1
jax: 0.10.0
libtpu: 0.0.40
codegen_flags: <defaults>
</compile_context>

<pallas_src>
import jax
import jax.numpy as jnp
from jax.experimental import pallas as pl
from jax.experimental.pallas import tpu as pltpu


def _round_up(x, m):
    return ((x + m - 1) // m) * m


def _fc_kernel(x_ref, w_ref, b_ref, o_ref):
    # x_ref: [TM, D]   w_ref: [D, C]   b_ref: [1, C]   o_ref: [TM, C]
    acc = jnp.dot(x_ref[...], w_ref[...], preferred_element_type=jnp.float32)
    o_ref[...] = (acc + b_ref[...].astype(jnp.float32)).astype(o_ref.dtype)


def prepare_classifier_params(weight, bias, compute_dtype=None):
    """One-time parameter prep (call at param setup, NOT per forward).

    weight: [C, D] (PyTorch nn.Linear layout)  ->  [D, C] (MXU-native K,N)
    bias:   [C]                                ->  [1, C]
    Both are cast to `compute_dtype` so activations/weights share a dtype on
    the MXU fast path.
    """
    if compute_dtype is None:
        compute_dtype = weight.dtype
    w_t = jnp.asarray(weight, dtype=compute_dtype).T          # [D, C]
    b_row = jnp.asarray(bias, dtype=compute_dtype).reshape(1, -1)  # [1, C]
    return w_t, b_row


def _vmem_budget_bytes():
    # Derive a scoped-VMEM request from the actual chip (v5e/v6e: 128 MiB
    # physical, v7x: 64 MiB per TC); leave ~50% headroom for Mosaic internals.
    try:
        cap = pltpu.get_tpu_info().vmem_capacity_bytes
    except Exception:
        cap = 64 * 1024 * 1024  # conservative fallback if the query is unavailable
    return int(min(cap // 2, 64 * 1024 * 1024))


def _pick_row_tile(n, d, c, itemsize, vmem_budget):
    """Row-tile (TM) selection.

    Budget: double-buffered x tile + double-buffered out tile per row, plus the
    (constant-index) weight/bias blocks which still get 2 buffers allocated.
    TM must be a multiple of 8 (sublane) or equal the full row extent.
    """
    if n <= 8:
        return n  # single block equal to the full extent (always valid)
    fixed = 2 * (d * c + c) * itemsize
    per_row = 2 * (d + c) * itemsize
    max_rows_by_vmem = max(8, (vmem_budget - fixed) // max(per_row, 1))
    tm = min(2048, int(max_rows_by_vmem))
    tm = max((tm // 8) * 8, 8)
    # Guarantee >= 2 grid steps so the "parallel" axis can be sharded across
    # v7x's two TensorCores (harmless on single-TC v5e/v6e).
    tm = min(tm, _round_up(pl.cdiv(n, 2), 8))
    return tm


def classification_network_forward(inputs, w_t, b_row):
    """Eval-mode forward of Classification_Network (scalar num_class branch).

    inputs: [N, D]  (N = batch * num_segments, already flattened)
    w_t:    [D, C]  (from prepare_classifier_params)
    b_row:  [1, C]
    returns {'logits': [N, C]}
    """
    n, d = inputs.shape
    c = w_t.shape[1]

    vmem_budget = _vmem_budget_bytes()
    tm = _pick_row_tile(n, d, c, inputs.dtype.itemsize, vmem_budget)
    grid = (pl.cdiv(n, tm),)

    x_bytes = inputs.dtype.itemsize
    w_bytes = w_t.dtype.itemsize
    cost = pl.CostEstimate(
        flops=2 * n * d * c,
        transcendentals=0,
        bytes_accessed=n * d * x_bytes + d * c * w_bytes + c * w_bytes + n * c * x_bytes,
    )

    logits = pl.pallas_call(
        _fc_kernel,
        out_shape=jax.ShapeDtypeStruct((n, c), inputs.dtype),
        grid=grid,
        in_specs=[
            pl.BlockSpec((tm, d), lambda i: (i, 0)),   # activations: tiled rows
            pl.BlockSpec((d, c), lambda i: (0, 0)),    # weight: full, constant block (no re-DMA)
            pl.BlockSpec((1, c), lambda i: (0, 0)),    # bias: full, constant block
        ],
        out_specs=pl.BlockSpec((tm, c), lambda i: (i, 0)),
        compiler_params=pltpu.CompilerParams(
            dimension_semantics=("parallel",),
            vmem_limit_bytes=vmem_budget,
        ),
        cost_estimate=cost,
    )(inputs, w_t, b_row)

    # TODO(synk): training-mode stochastic dropout (pltpu.prng_seed +
    # prng_random_bits mask fused before the dot) not implemented; eval-mode
    # dropout is the identity, matching model.eval() semantics.
    # TODO(synk): the list/tuple num_class (verb/noun) branch of the reference
    # module calls an undefined `self.consensus`, so only the scalar num_class
    # path is implemented.
    return {"logits": logits}


if __name__ == "__main__":
    # Module config (small, consistent with the forward pass):
    feature_dim = 32
    num_class = 16          # scalar -> fc_action branch
    num_segments = 4
    batch = 2
    dropout = 0.5           # eval-mode -> identity

    key = jax.random.PRNGKey(0)
    k_in, k_w = jax.random.split(key)

    # Inputs to the classifier: flattened (batch * num_segments, feature_dim).
    n = batch * num_segments
    x = jax.random.normal(k_in, (n, feature_dim), dtype=jnp.float32)

    # Deterministic parameter init matching __init__: normal_(W, 0, 0.001), bias = 0.
    std = 0.001
    weight = std * jax.random.normal(k_w, (num_class, feature_dim), dtype=jnp.float32)
    bias = jnp.zeros((num_class,), dtype=jnp.float32)

    # One-time param prep (transpose to MXU-native [D, C], cast to input dtype).
    w_t, b_row = prepare_classifier_params(weight, bias, compute_dtype=x.dtype)

    out = classification_network_forward(x, w_t, b_row)
    logits = jax.block_until_ready(out["logits"])

    # Sanity check against plain JAX reference.
    ref = x @ weight.T + bias
    assert logits.shape == (n, num_class)
    assert jnp.allclose(logits, ref, atol=1e-5, rtol=1e-5)

    print("KERNEL_OK")
</pallas_src>

<mosaic_0001>
module attributes {stable_mosaic.version = 11 : i64} {
  func.func @_fc_kernel(%arg0: i32, %arg1: memref<8x32xf32, #tpu.memory_space<vmem>>, %arg2: memref<32x16xf32, #tpu.memory_space<vmem>>, %arg3: memref<1x16xf32, #tpu.memory_space<vmem>>, %arg4: memref<8x16xf32, #tpu.memory_space<vmem>>) attributes {dimension_semantics = [#tpu.dimension_semantics<parallel>], iteration_bounds = array<i64: 1>, scalar_prefetch = 0 : i64, scratch_operands = 0 : i64, tpu.core_type = #tpu.core_type<tc>, window_params = [{transform_indices = @transform_0, window_bounds = array<i64: 8, 32>}, {pipeline_mode = #tpu.pipeline_mode<synchronous>, transform_indices = @transform_1, window_bounds = array<i64: 32, 16>}, {pipeline_mode = #tpu.pipeline_mode<synchronous>, transform_indices = @transform_2, window_bounds = array<i64: 1, 16>}, {transform_indices = @transform_3, window_bounds = array<i64: 8, 16>}]} {
    %c0 = arith.constant 0 : index
    %c0_0 = arith.constant 0 : index
    %0 = vector.load %arg1[%c0, %c0_0] : memref<8x32xf32, #tpu.memory_space<vmem>>, vector<8x32xf32>
    %c0_1 = arith.constant 0 : index
    %c0_2 = arith.constant 0 : index
    %1 = vector.load %arg2[%c0_1, %c0_2] : memref<32x16xf32, #tpu.memory_space<vmem>>, vector<32x16xf32>
    %cst = arith.constant dense<0.000000e+00> : vector<8x16xf32>
    %2 = tpu.matmul %0, %1, %cst {dimension_numbers = #tpu.dot_dimension_numbers<[1], [0], [0], [1], [0, 0, 1, 1], [], []>} : vector<8x32xf32>, vector<32x16xf32>, vector<8x16xf32> -> vector<8x16xf32>
    %c0_3 = arith.constant 0 : index
    %c0_4 = arith.constant 0 : index
    %3 = vector.load %arg3[%c0_3, %c0_4] : memref<1x16xf32, #tpu.memory_space<vmem>>, vector<1x16xf32>
    %4 = vector.broadcast %3 : vector<1x16xf32> to vector<8x16xf32>
    %5 = arith.addf %2, %4 : vector<8x16xf32>
    %c0_5 = arith.constant 0 : index
    %c0_6 = arith.constant 0 : index
    %6 = vector.load %arg4[%c0_5, %c0_6] : memref<8x16xf32, #tpu.memory_space<vmem>>, vector<8x16xf32>
    tpu.vector_store %arg4[%c0_5, %c0_6], %5 {strides = array<i32>} : memref<8x16xf32, #tpu.memory_space<vmem>>, vector<8x16xf32>,
    return
  }
  func.func @transform_0(%arg0: i32) -> (i32, i32) {
    %c0_i32 = arith.constant 0 : i32
    %c0_i32_0 = arith.constant 0 : i32
    return %arg0, %c0_i32 : i32, i32
  }
  func.func @transform_1(%arg0: i32) -> (i32, i32) {
    %c0_i32 = arith.constant 0 : i32
    %c0_i32_0 = arith.constant 0 : i32
    %c0_i32_1 = arith.constant 0 : i32
    return %c0_i32, %c0_i32_0 : i32, i32
  }
  func.func @transform_2(%arg0: i32) -> (i32, i32) {
    %c0_i32 = arith.constant 0 : i32
    %c0_i32_0 = arith.constant 0 : i32
    %c0_i32_1 = arith.constant 0 : i32
    return %c0_i32, %c0_i32_0 : i32, i32
  }
  func.func @transform_3(%arg0: i32) -> (i32, i32) {
    %c0_i32 = arith.constant 0 : i32
    %c0_i32_0 = arith.constant 0 : i32
    return %arg0, %c0_i32 : i32, i32
  }
}

</mosaic_0001>

<llo_original>
// kernel: tpu_custom_call.1
$region0: #{tpu_custom_call.1}
  #allocation0 [shape = 'u32[]', space=smem, size = 0x4, offset = 0x4, fixed_abs, tag = 'smem constant byte address 0x4 - core index']
  #allocation1 [shape = 'u32[144,128]{1,0:T(1,128)}', space=vmem, size = 0x12000, scoped, tag = 'internal scratch']
  %s0 = inlined_call_operand.vmem [shape: f32[8,32], index: 0, kind: input, shape index: {}]
  %s1 = inlined_call_operand.vmem [shape: f32[32,16], index: 1, kind: input, shape index: {}]
  %s2 = inlined_call_operand.vmem [shape: f32[1,16], index: 2, kind: input, shape index: {}]
  %s3 = inlined_call_operand.hbm [shape: f32[8,16], index: 3, kind: output, shape index: {}]
  %s4 = sld [smem:[#allocation0]]
  $region22: #{tpu_custom_call.1} parent=0
    _
  %s6 = ssub.s32 1, %s4
  %s7 = scalar_select 0, %s6, %s4
  $region1: #{tpu_custom_call.1} parent=0
    #allocation2 [shape = 'u8[4096]{0}', space=vmem, size = 0x1000, scoped, tag = 'output window, operand 0, single buffered']
    #allocation3 [shape = 's32[1]{0}', space=sflag, size = 0x4, scoped, tag = 'scoped memory for tpu_custom_call.1']
    %8 = vsyncpa [#allocation3], 0
    // Predicated region
    $region2: #{tpu_custom_call.1} parent=1 // pred_check
      _
    $region3: #{tpu_custom_call.1} parent=1 // pred_check_branch
      %10 = sbr.rel (0) target = $region5
    $region4: #{tpu_custom_call.1} parent=1 // pred_region
      _
    $region5: #{tpu_custom_call.1} parent=1 // pred_fallthru
      _
    // Predicated region
    $region6: #{tpu_custom_call.1} parent=1 // pred_check
      _
    $region7: #{tpu_custom_call.1} parent=1 // pred_check_branch
      %12 = sbr.rel (0) target = $region9
    $region8: #{tpu_custom_call.1} parent=1 // pred_region
      _
    $region9: #{tpu_custom_call.1} parent=1 // pred_fallthru
      _
    // Predicated region
    $region10: #{tpu_custom_call.1} parent=1 // pred_check
      _
    $region11: #{tpu_custom_call.1} parent=1 // pred_check_branch
      %14 = sbr.rel (0) target = $region13
    $region12: #{tpu_custom_call.1} parent=1 // pred_region
      _
    $region13: #{tpu_custom_call.1} parent=1 // pred_fallthru
      _
    %v15 = vld [vmem:[%s0] sm:$0xff]
    %v16 = vld [vmem:[%s1] sm:$0xff]
    %v17 = vld [vmem:[%s1 + $0x8] sm:$0xff]
    %v18 = vld [vmem:[%s1 + $0x10] sm:$0xff]
    %v19 = vld [vmem:[%s1 + $0x18] sm:$0xff]
    %v20 = vld [vmem:[%s2] sm:$0x1]
    %v22 = vlaneseq
    %v23 = vshrl.u32 %v22, 7
    %v24 = vsub.s32 0, %v23
    %v25 = vrot.slane %v20, %v24
    %vm27 = vcmask 261120
    %v29 = vsel %vm27, %v15, 0
    %31 = vmatprep.subr.mxu0 0.0
    %32 = vmatpush1.msra.mxu0 0.0
    %33 = vmatprep.subr.mxu0 0.0
    %34 = vmatpush1.msra.mxu0 0.0
    %35 = vmatprep.subr.mxu0 0.0
    %36 = vmatpush1.msra.mxu0 0.0
    %37 = vmatprep.subr.mxu0 0.0
    %38 = vmatpush1.msra.mxu0 0.0
    %39 = vmatprep.subr.mxu0 0.0
    %40 = vmatpush1.msra.mxu0 0.0
    %41 = vmatprep.subr.mxu0 0.0
    %42 = vmatpush1.msra.mxu0 0.0
    %43 = vmatprep.subr.mxu0 0.0
    %44 = vmatpush1.msra.mxu0 0.0
    %45 = vmatprep.subr.mxu0 0.0
    %46 = vmatpush1.msra.mxu0 0.0
    %47 = vmatprep.subr.mxu0 0.0
    %48 = vmatpush1.msra.mxu0 0.0
    %49 = vmatprep.subr.mxu0 0.0
    %50 = vmatpush1.msra.mxu0 0.0
    %51 = vmatprep.subr.mxu0 0.0
    %52 = vmatpush1.msra.mxu0 0.0
    %53 = vmatprep.subr.mxu0 0.0
    %54 = vmatpush1.msra.mxu0 0.0
    %55 = vmatprep.subr.mxu0 0.0
    %56 = vmatpush1.msra.mxu0 %v19
    %57 = vmatprep.subr.mxu0 0.0
    %58 = vmatpush1.msra.mxu0 %v18
    %59 = vmatprep.subr.mxu0 0.0
    %60 = vmatpush1.msra.mxu0 %v17
    %61 = vmatprep.subr.mxu0 0.0
    %62 = vmatpush1.msra.mxu0 %v16
    %63 = vmatprep.subr.mxu0 0.0
    %64 = vmatpush2.msra.mxu0 0.0
    %65 = vmatprep.subr.mxu0 0.0
    %66 = vmatpush2.msra.mxu0 0.0
    %67 = vmatprep.subr.mxu0 0.0
    %68 = vmatpush2.msra.mxu0 0.0
    %69 = vmatprep.subr.mxu0 0.0
    %70 = vmatpush2.msra.mxu0 0.0
    %71 = vmatprep.subr.mxu0 0.0
    %72 = vmatpush2.msra.mxu0 0.0
    %73 = vmatprep.subr.mxu0 0.0
    %74 = vmatpush2.msra.mxu0 0.0
    %75 = vmatprep.subr.mxu0 0.0
    %76 = vmatpush2.msra.mxu0 0.0
    %77 = vmatprep.subr.mxu0 0.0
    %78 = vmatpush2.msra.mxu0 0.0
    %79 = vmatprep.subr.mxu0 0.0
    %80 = vmatpush2.msra.mxu0 0.0
    %81 = vmatprep.subr.mxu0 0.0
    %82 = vmatpush2.msra.mxu0 0.0
    %83 = vmatprep.subr.mxu0 0.0
    %84 = vmatpush2.msra.mxu0 0.0
    %85 = vmatprep.subr.mxu0 0.0
    %86 = vmatpush2.msra.mxu0 0.0
    %87 = vmatprep.subr.mxu0 0.0
    %88 = vmatpush2.msra.mxu0 0.0
    %89 = vmatprep.subr.mxu0 0.0
    %90 = vmatpush2.msra.mxu0 0.0
    %91 = vmatprep.subr.mxu0 0.0
    %92 = vmatpush2.msra.mxu0 0.0
    %93 = vmatprep.subr.mxu0 0.0
    %94 = vmatpush2.msra.mxu0 0.0
    %95 = vmatprep.mubr.f32.mxu0 0.0
    %96 = vmatmul.mubr.f32.gmra.mxu0 %v29
    %v97 = vpop.f32.mrf.mxu0
    %v98 = vadd.f32 %v25, %v97
    %v99 = vpop.f32.mrf.mxu0
    %100 = vdwg.mxu0
    %vm101 = vcmask 130048
    %102 = vst.msk [vmem:[#allocation2] sm:$0xff] %vm101, %v98
    // Predicated region
    $region14: #{tpu_custom_call.1} parent=1 // pred_check
      _
    $region15: #{tpu_custom_call.1} parent=1 // pred_check_branch
      %104 = sbr.rel (0) target = $region17
    $region16: #{tpu_custom_call.1} parent=1 // pred_region
      %s106 = ssub.s32 128, 128
      %107 = vsyncadd [#allocation3], %s106
      %s109 = sshll.u32 [#allocation2], 4
      %s110 = int_to_ptr.vmem [resolvable:$true] %s109
      %112 = dma.vmem_to_hbm [thread:$0]  %s110, 128, %s3, [#allocation3]
    $region17: #{tpu_custom_call.1} parent=1 // pred_fallthru
      _
    // Predicated region
    $region18: #{tpu_custom_call.1} parent=1 // pred_check
      _
    $region19: #{tpu_custom_call.1} parent=1 // pred_check_branch
      %114 = sbr.rel (0) target = $region21
    $region20: #{tpu_custom_call.1} parent=1 // pred_region
      %115 = dma.done [#allocation3], 128
    $region21: #{tpu_custom_call.1} parent=1 // pred_fallthru
      _
    %116 = vsyncpa [#allocation3], 1

</llo_original>
